<compile_context>
chip_gen: v6e
topology: v6e:2x2x1
jax: 0.10.0
libtpu: 0.0.40
codegen_flags: <defaults>
</compile_context>

<pallas_src>
import jax
import jax.numpy as jnp
from jax.experimental import pallas as pl
from jax.experimental.pallas import tpu as pltpu

_LANE = 128
_MIN_STEPS_BYTES = 1 << 20  # don't force multi-step grids on tiny tensors


def _mfm_kernel(x_ref, o_ref):
    # x_ref: (TB, 2, TR, L)  -- both channel halves of the same payload tile.
    # o_ref: (TB, TR, L)
    o_ref[...] = jnp.maximum(x_ref[:, 0], x_ref[:, 1])


def _divisors(n):
    out, d = set(), 1
    while d * d <= n:
        if n % d == 0:
            out.add(d)
            out.add(n // d)
        d += 1
    return sorted(out)


def _tile_policy():
    """Per-generation (input-bytes-per-step target, min grid steps)."""
    kind = ""
    try:
        kind = jax.devices()[0].device_kind.lower()
    except Exception:
        pass
    if "v7" in kind or "7x" in kind:
        return 8 << 20, 4  # 3.2 TB/s HBM; 2 TCs -> want several parallel steps
    if "v6" in kind:
        return 6 << 20, 1
    if "v5" in kind:
        return 3 << 20, 1  # stays well inside v5e's 16 MiB scoped-VMEM default
    return 4 << 20, 1


def _vmem_limit_bytes(in_tile_bytes):
    # Double-buffered input + output (output tile = input/2) plus margin.
    # Always < 64 MiB so it is safe on v7x physical VMEM as well.
    need = 3 * in_tile_bytes + (8 << 20)
    return int(min(48 << 20, max(24 << 20, need)))


def _pick_tb(B, per_batch_bytes, target_bytes):
    """Merge batch elements per tile when the per-batch payload is small."""
    tb_budget = max(1, target_bytes // max(per_batch_bytes, 1))
    tb = max(d for d in _divisors(B) if d <= tb_budget)  # divisor: no ragged edge
    if tb_budget >= 2 and tb * 2 <= tb_budget:
        tb = min(B, tb_budget)  # accept a ragged batch edge if it amortizes more
    return tb


def _layout_lane_dense(P, B, itemsize, target_bytes, min_steps):
    """P % 128 == 0: payload -> (R, L) slab, tiles (TB, TR)."""
    L = _LANE
    for cand in (2048, 1024, 512, 256, 128):
        if P % cand == 0:
            L = cand
            break
    R = P // L
    sub = 8 if itemsize >= 4 else (16 if itemsize == 2 else 32)
    row_bytes = 2 * L * itemsize  # one payload row, both halves
    budget_rows = max(1, target_bytes // row_bytes)

    if R <= budget_rows:
        TR = R
        TB = _pick_tb(B, R * row_bytes, target_bytes)
    elif R <= sub:
        TR, TB = R, 1
    else:
        TB = 1
        cand = [d for d in _divisors(R) if d % sub == 0 and d <= budget_rows]
        TR = max(cand) if cand else max(sub, (budget_rows // sub) * sub)

    # v7x: guarantee both TensorCores get work (min_steps > 1 only there).
    def steps(tb, tr):
        return pl.cdiv(B, tb) * pl.cdiv(R, tr)

    while steps(TB, TR) < min_steps:
        if TB > 1:
            TB = (TB + 1) // 2
        elif TR > sub:
            new_tr = max(sub, (TR // 2 // sub) * sub)
            if new_tr == TR:
                break
            TR = new_tr
        else:
            break
    return L, R, TB, TR


def _layout_tail(P, B, itemsize, target_bytes, min_steps):
    """P % 128 != 0: flat payload streamed in lane-dense 128-multiple column
    tiles; only the final ragged column block uses masked stores."""
    if P < _LANE:
        CW = P  # full extent (legal block shape; masked lanes, tiny payload)
    else:
        col_budget = max(_LANE, (target_bytes // (2 * itemsize) // _LANE) * _LANE)
        CW = min((P // _LANE) * _LANE, col_budget)
    TB = _pick_tb(B, 2 * CW * itemsize, target_bytes)

    def steps(tb, cw):
        return pl.cdiv(B, tb) * pl.cdiv(P, cw)

    while steps(TB, CW) < min_steps:
        if TB > 1:
            TB = (TB + 1) // 2
        elif CW > _LANE and CW != P:
            new_cw = max(_LANE, (CW // 2 // _LANE) * _LANE)
            if new_cw == CW:
                break
            CW = new_cw
        else:
            break
    return TB, CW


def max_feature_map_2d(x: jax.Array) -> jax.Array:
    """MaxFeatureMap2D forward: (B, C, H, W) -> (B, C//2, H, W)."""
    B, C, H, W = x.shape
    assert C % 2 == 0, "channel dim must be even"
    half = C // 2
    P = half * H * W  # per-half payload per batch element
    itemsize = x.dtype.itemsize

    target, min_steps = _tile_policy()
    if 2 * B * P * itemsize < _MIN_STEPS_BYTES:
        min_steps = 1  # tiny tensors: a single grid step is cheapest

    cost = pl.CostEstimate(flops=B * P, transcendentals=0,
                           bytes_accessed=3 * B * P * itemsize)

    if P % _LANE == 0:
        L, R, TB, TR = _layout_lane_dense(P, B, itemsize, target, min_steps)
        x4 = x.reshape(B, 2, R, L)  # free contiguous view of NCHW
        grid = (pl.cdiv(B, TB), pl.cdiv(R, TR))
        in_tile = TB * 2 * TR * L * itemsize
        out3 = pl.pallas_call(
            _mfm_kernel,
            out_shape=jax.ShapeDtypeStruct((B, R, L), x.dtype),
            grid=grid,
            in_specs=[pl.BlockSpec((TB, 2, TR, L), lambda b, r: (b, 0, r, 0))],
            out_specs=pl.BlockSpec((TB, TR, L), lambda b, r: (b, r, 0)),
            compiler_params=pltpu.CompilerParams(
                dimension_semantics=("parallel", "parallel"),
                vmem_limit_bytes=_vmem_limit_bytes(in_tile)),
            cost_estimate=cost,
        )(x4)
        return out3.reshape(B, half, H, W)

    # Tail path: P not a multiple of 128.
    TB, CW = _layout_tail(P, B, itemsize, target, min_steps)
    x4 = x.reshape(B, 2, 1, P)  # free contiguous view of NCHW
    grid = (pl.cdiv(B, TB), pl.cdiv(P, CW))
    in_tile = TB * 2 * CW * itemsize
    out3 = pl.pallas_call(
        _mfm_kernel,
        out_shape=jax.ShapeDtypeStruct((B, 1, P), x.dtype),
        grid=grid,
        in_specs=[pl.BlockSpec((TB, 2, 1, CW), lambda b, c: (b, 0, 0, c))],
        out_specs=pl.BlockSpec((TB, 1, CW), lambda b, c: (b, 0, c)),
        compiler_params=pltpu.CompilerParams(
            dimension_semantics=("parallel", "parallel"),
            vmem_limit_bytes=_vmem_limit_bytes(in_tile)),
        cost_estimate=cost,
    )(x4)
    return out3.reshape(B, half, H, W)


if __name__ == "__main__":
    key0, key1 = jax.random.split(jax.random.PRNGKey(0))

    # Main check: small NCHW input consistent with the module.
    x = jax.random.uniform(key0, (2, 4, 16, 16), dtype=jnp.float32)
    out = jax.block_until_ready(max_feature_map_2d(x))
    ref = jnp.maximum(x[:, :2], x[:, 2:])
    assert out.shape == (2, 2, 16, 16), out.shape
    assert jnp.allclose(out, ref), "mismatch vs reference (lane-dense path)"

    # Also exercise the P % 128 != 0 path (like the docstring's (1,4,5,5) case).
    y = jax.random.uniform(key1, (2, 4, 5, 5), dtype=jnp.float32)
    out2 = jax.block_until_ready(max_feature_map_2d(y))
    ref2 = jnp.maximum(y[:, :2], y[:, 2:])
    assert out2.shape == (2, 2, 5, 5), out2.shape
    assert jnp.allclose(out2, ref2), "mismatch vs reference (tail path)"

    print("KERNEL_OK")
</pallas_src>

<mosaic_0001>
module attributes {stable_mosaic.version = 11 : i64} {
  func.func @_mfm_kernel(%arg0: i32, %arg1: i32, %arg2: memref<2x2x1x512xf32, #tpu.memory_space<vmem>>, %arg3: memref<2x1x512xf32, #tpu.memory_space<vmem>>) attributes {dimension_semantics = [#tpu.dimension_semantics<parallel>, #tpu.dimension_semantics<parallel>], iteration_bounds = array<i64: 1, 1>, scalar_prefetch = 0 : i64, scratch_operands = 0 : i64, tpu.core_type = #tpu.core_type<tc>, window_params = [{transform_indices = @transform_0, window_bounds = array<i64: 2, 2, 1, 512>}, {transform_indices = @transform_1, window_bounds = array<i64: 2, 1, 512>}]} {
    %c0 = arith.constant 0 : index
    %c0_0 = arith.constant 0 : index
    %c0_1 = arith.constant 0 : index
    %c0_2 = arith.constant 0 : index
    %0 = vector.load %arg2[%c0, %c0_0, %c0_1, %c0_2] : memref<2x2x1x512xf32, #tpu.memory_space<vmem>>, vector<2x1x1x512xf32>
    %1 = vector.shape_cast %0 : vector<2x1x1x512xf32> to vector<2x1x512xf32>
    %c0_3 = arith.constant 0 : index
    %c1 = arith.constant 1 : index
    %c0_4 = arith.constant 0 : index
    %c0_5 = arith.constant 0 : index
    %2 = vector.load %arg2[%c0_3, %c1, %c0_4, %c0_5] : memref<2x2x1x512xf32, #tpu.memory_space<vmem>>, vector<2x1x1x512xf32>
    %3 = vector.shape_cast %2 : vector<2x1x1x512xf32> to vector<2x1x512xf32>
    %4 = arith.maximumf %1, %3 : vector<2x1x512xf32>
    %c0_6 = arith.constant 0 : index
    %c0_7 = arith.constant 0 : index
    %c0_8 = arith.constant 0 : index
    %5 = vector.load %arg3[%c0_6, %c0_7, %c0_8] : memref<2x1x512xf32, #tpu.memory_space<vmem>>, vector<2x1x512xf32>
    tpu.vector_store %arg3[%c0_6, %c0_7, %c0_8], %4 {strides = array<i32>} : memref<2x1x512xf32, #tpu.memory_space<vmem>>, vector<2x1x512xf32>,
    return
  }
  func.func @transform_0(%arg0: i32, %arg1: i32) -> (i32, i32, i32, i32) {
    %c0_i32 = arith.constant 0 : i32
    %c0_i32_0 = arith.constant 0 : i32
    %c0_i32_1 = arith.constant 0 : i32
    return %arg0, %c0_i32, %arg1, %c0_i32_0 : i32, i32, i32, i32
  }
  func.func @transform_1(%arg0: i32, %arg1: i32) -> (i32, i32, i32) {
    %c0_i32 = arith.constant 0 : i32
    %c0_i32_0 = arith.constant 0 : i32
    return %arg0, %arg1, %c0_i32 : i32, i32, i32
  }
}

</mosaic_0001>

<llo_original>
// kernel: tpu_custom_call.1
$region0: #{tpu_custom_call.1}
  #allocation0 [shape = 'u32[]', space=smem, size = 0x4, offset = 0x4, fixed_abs, tag = 'smem constant byte address 0x4 - core index']
  #allocation1 [shape = 'u32[144,128]{1,0:T(1,128)}', space=vmem, size = 0x12000, scoped, tag = 'internal scratch']
  %s0 = inlined_call_operand.hbm [shape: f32[2,2,1,512], index: 0, kind: input, shape index: {}]
  %s1 = inlined_call_operand.hbm [shape: f32[2,1,512], index: 1, kind: output, shape index: {}]
  %s2 = sld [smem:[#allocation0]]
  $region18: #{tpu_custom_call.1} parent=0
    _
  %s4 = ssub.s32 1, %s2
  %s5 = scalar_select 0, %s4, %s2
  $region1: #{tpu_custom_call.1} parent=0
    #allocation2 [shape = 'u8[8192]{0}', space=vmem, size = 0x2000, scoped, tag = 'input window, operand 0, single buffered']
    #allocation3 [shape = 's32[1]{0}', space=sflag, size = 0x4, scoped, tag = 'scoped memory for tpu_custom_call.1']
    #allocation4 [shape = 's32[1]{0}', space=sflag, size = 0x4, scoped, tag = 'scoped memory for tpu_custom_call.1']
    #allocation5 [shape = 'u8[4096]{0}', space=vmem, size = 0x1000, scoped, tag = 'output window, operand 0, single buffered']
    %6 = vsyncpa [#allocation3], 0
    %7 = vsyncpa [#allocation4], 0
    // Predicated region
    $region2: #{tpu_custom_call.1} parent=1 // pred_check
      _
    $region3: #{tpu_custom_call.1} parent=1 // pred_check_branch
      %9 = sbr.rel (0) target = $region5
    $region4: #{tpu_custom_call.1} parent=1 // pred_region
      %s11 = ssub.s32 256, 256
      %12 = vsyncadd [#allocation3], %s11
      %s13 = sshll.u32 [#allocation2], 4
      %s14 = int_to_ptr.vmem [resolvable:$true] %s13
      %19 = dma.hbm_to_vmem [thread:$0]  %s0, 256, %s14, [#allocation3], 64, 64, 4
    $region5: #{tpu_custom_call.1} parent=1 // pred_fallthru
      _
    // Predicated region
    $region6: #{tpu_custom_call.1} parent=1 // pred_check
      _
    $region7: #{tpu_custom_call.1} parent=1 // pred_check_branch
      %21 = sbr.rel (0) target = $region9
    $region8: #{tpu_custom_call.1} parent=1 // pred_region
      %22 = dma.done [#allocation3], 256
    $region9: #{tpu_custom_call.1} parent=1 // pred_fallthru
      _
    %v23 = vld [vmem:[#allocation2] sm:$0xf]
    %v24 = vld [vmem:[#allocation2 + $0x8] sm:$0xf]
    %s25 = scalar_lea.vmem [#allocation2], 4
    %v26 = vld [vmem:[%s25] sm:$0xf]
    %v27 = vld [vmem:[%s25 + $0x8] sm:$0xf]
    %v28 = vmax.f32 %v23, %v26
    %v29 = vmax.f32 %v24, %v27
    %v30 = vlaneseq
    %vm31 = vcmp.ge.s32.totalorder %v30, 0
    %vm32 = vcmp.lt.s32.totalorder %v30, 512
    %vm33 = vmand %vm31, %vm32
    %34 = vst.msk [vmem:[#allocation5] sm:$0xf] %vm33, %v28
    %35 = vst.msk [vmem:[#allocation5 + $0x4] sm:$0xf] %vm33, %v29
    // Predicated region
    $region10: #{tpu_custom_call.1} parent=1 // pred_check
      _
    $region11: #{tpu_custom_call.1} parent=1 // pred_check_branch
      %37 = sbr.rel (0) target = $region13
    $region12: #{tpu_custom_call.1} parent=1 // pred_region
      %s39 = ssub.s32 128, 128
      %40 = vsyncadd [#allocation4], %s39
      %s41 = sshll.u32 [#allocation5], 4
      %s42 = int_to_ptr.vmem [resolvable:$true] %s41
      %47 = dma.vmem_to_hbm [thread:$0]  %s42, 128, %s1, [#allocation4], 64, 64, 4
    $region13: #{tpu_custom_call.1} parent=1 // pred_fallthru
      _
    // Predicated region
    $region14: #{tpu_custom_call.1} parent=1 // pred_check
      _
    $region15: #{tpu_custom_call.1} parent=1 // pred_check_branch
      %49 = sbr.rel (0) target = $region17
    $region16: #{tpu_custom_call.1} parent=1 // pred_region
      %50 = dma.done [#allocation4], 128
    $region17: #{tpu_custom_call.1} parent=1 // pred_fallthru
      _
    %51 = vsyncpa [#allocation3], 1
    %52 = vsyncpa [#allocation4], 1

</llo_original>
